<compile_context>
chip_gen: v6e
topology: v6e:2x2x1
jax: 0.10.0
libtpu: 0.0.40
codegen_flags: <defaults>
</compile_context>

<pallas_src>
import functools

import jax
import jax.numpy as jnp
from jax.experimental import pallas as pl
from jax.experimental.pallas import tpu as pltpu


_LANE = 128
_SUBLANE = 8
_NEG_BIG = -1e30  # f32-safe "minus infinity" for padded class columns


def _round_up(n: int, m: int) -> int:
    return (n + m - 1) // m * m


def _mlr_forward_kernel(x_ref, w_ref, b_ref, o_ref, *, num_classes):
    # x_ref: [TM, K] native dtype   w_ref: [K, Cp] bf16   b_ref: [1, Cp] f32
    # o_ref: [TM, num_classes] f32  (Cp = round_up(num_classes, 128))
    x = x_ref[...].astype(w_ref.dtype)          # bf16 -> single-pass MXU matmul
    logits = jnp.dot(x, w_ref[...], preferred_element_type=jnp.float32)
    logits = logits + b_ref[...]                # f32 bias; padded cols = -1e30

    # Row-wise numerically stable softmax, all in f32 (no bf16 VPU on v5e).
    m = jnp.max(logits, axis=-1, keepdims=True)
    e = jnp.exp(logits - m)                     # padded cols -> exp(-huge) == 0
    s = jnp.sum(e, axis=-1, keepdims=True)
    probs = e * pl.reciprocal(s, approx=True)   # EUP vrcp; ~1e-4 rel error

    # Store only the real classes: output array is unpadded, so there is no
    # post-kernel slice copy and ~13x fewer bytes written for 10 classes.
    o_ref[...] = probs[:, :num_classes].astype(o_ref.dtype)


@functools.partial(jax.jit, static_argnames=("num_classes", "tm"))
def _mlr_forward_padded(x, w_pad, b_pad, *, num_classes, tm=512):
    """softmax(x @ W + b) with pre-padded/pre-cast W (bf16, [K, Cp]) and b ([1, Cp])."""
    batch, k = x.shape
    kw, cp = w_pad.shape
    assert kw == k, "x / W feature dims must match"
    assert cp % _LANE == 0 and b_pad.shape == (1, cp)

    # Batch tiling without padding X. If the whole batch fits in one tile, try
    # to split it into two so v7x's two TensorCores both get a grid step.
    if batch > tm:
        tm_eff = tm
    else:
        half = _round_up(pl.cdiv(batch, 2), _SUBLANE)
        tm_eff = half if half < batch else batch   # == batch -> full-dim block, always legal
    grid = (pl.cdiv(batch, tm_eff),)

    # Derived VMEM budget (bytes): single-buffered W/b, double-buffered X/out,
    # plus headroom for in-kernel f32 logits/exp temporaries.
    # TODO(synk): if k * cp * 2 grows past ~24 MiB (v7x has 64 MiB/TC), stop
    # keeping W fully resident and add a K-tile / class-tile grid axis.
    x_item = jnp.dtype(x.dtype).itemsize
    w_bytes = k * cp * jnp.dtype(w_pad.dtype).itemsize
    b_bytes = cp * 4
    x_bytes = 2 * tm_eff * k * x_item
    o_bytes = 2 * tm_eff * num_classes * 4
    tmp_bytes = 4 * tm_eff * cp * 4
    vmem_limit = int(
        min(max((w_bytes + b_bytes + x_bytes + o_bytes + tmp_bytes) * 5 // 4 + (4 << 20),
                16 << 20),
            64 << 20))

    kernel = functools.partial(_mlr_forward_kernel, num_classes=num_classes)
    return pl.pallas_call(
        kernel,
        out_shape=jax.ShapeDtypeStruct((batch, num_classes), jnp.float32),
        grid_spec=pltpu.PrefetchScalarGridSpec(
            num_scalar_prefetch=0,
            grid=grid,
            in_specs=[
                # X: batch-tiled, last dim equals the full (unpadded) feature dim.
                pl.BlockSpec((tm_eff, k), lambda i: (i, 0)),
                # W / b: resident across the whole grid -> single buffer.
                pl.BlockSpec((k, cp), lambda i: (0, 0),
                             pipeline_mode=pl.Buffered(buffer_count=1)),
                pl.BlockSpec((1, cp), lambda i: (0, 0),
                             pipeline_mode=pl.Buffered(buffer_count=1)),
            ],
            out_specs=pl.BlockSpec((tm_eff, num_classes), lambda i: (i, 0)),
        ),
        compiler_params=pltpu.CompilerParams(
            # parallel batch axis -> dual-TC sharding on v7x, neutral elsewhere.
            dimension_semantics=("parallel",),
            vmem_limit_bytes=vmem_limit,
        ),
    )(x, w_pad, b_pad)


def mlr_loss(y_hat, y):
    """Negative log-likelihood given softmax probabilities (module's loss())."""
    # TODO(synk): fuse log-softmax + NLL gather into the kernel epilogue for
    # exact numerics (no log(p + eps)) and per-row-scalar HBM writeback.
    eps = 1e-12
    picked = jnp.take_along_axis(y_hat, y[:, None], axis=-1)[:, 0]
    return -jnp.mean(jnp.log(picked + eps))


class MultinomialLogisticRegression:
    """Lightweight JAX/Pallas mirror of the PyTorch module."""

    def __init__(self, num_inputs, num_classes, key=None):
        if key is None:
            key = jax.random.PRNGKey(0)
        kw, kb = jax.random.split(key)
        self.num_inputs = num_inputs
        self.num_classes = num_classes
        self.W = jax.random.normal(kw, (num_inputs, num_classes), jnp.float32) * 0.1
        self.b = jax.random.normal(kb, (num_classes,), jnp.float32) * 0.01

        # Pre-pad / pre-cast the parameters ONCE (not per forward call):
        #   W -> bf16, class dim zero-padded to a lane multiple (MXU lane-dense)
        #   b -> f32, padded class columns at -1e30 so they softmax to ~0.
        cp = _round_up(num_classes, _LANE)
        self.Wp = jnp.pad(self.W, ((0, 0), (0, cp - num_classes))).astype(jnp.bfloat16)
        self.bp = jnp.pad(self.b.reshape(1, num_classes).astype(jnp.float32),
                          ((0, 0), (0, cp - num_classes)),
                          constant_values=_NEG_BIG)

    def forward(self, X):
        return _mlr_forward_padded(X, self.Wp, self.bp, num_classes=self.num_classes)

    def loss(self, y_hat, y):
        return mlr_loss(y_hat, y)


if __name__ == "__main__":
    # Deterministic synthetic inputs (no file / network access).
    batch = 8
    num_inputs = 32
    num_classes = 10

    key = jax.random.PRNGKey(0)
    kx, kmod, ky, kx2, kx3 = jax.random.split(key, 5)

    x = jax.random.normal(kx, (batch, num_inputs), dtype=jnp.float32)
    y = jax.random.randint(ky, (batch,), 0, num_classes)

    model = MultinomialLogisticRegression(num_inputs, num_classes, key=kmod)

    def ref_fwd(xx):
        return jax.nn.softmax(xx @ model.W + model.b[None, :], axis=-1)

    # bf16 matmul inputs + approx reciprocal -> compare vs f32 reference at 1e-2.
    tol = dict(atol=1e-2, rtol=1e-2)

    # --- small batch: single grid step, block rows == full batch dim ---
    y_hat = jax.block_until_ready(model.forward(x))
    assert y_hat.shape == (batch, num_classes)
    assert jnp.allclose(y_hat, ref_fwd(x), **tol), "mismatch vs reference (small batch)"

    loss_val = jax.block_until_ready(model.loss(y_hat, y))
    assert jnp.isfinite(loss_val)

    # --- 384 rows: two 192-row "parallel" grid steps (dual-TC on v7x) ---
    x2 = jax.random.normal(kx2, (384, num_inputs), dtype=jnp.float32)
    y_hat2 = jax.block_until_ready(model.forward(x2))
    assert y_hat2.shape == (384, num_classes)
    assert jnp.allclose(y_hat2, ref_fwd(x2), **tol), "mismatch vs reference (384 rows)"

    # --- 300 rows: ragged last block (2 x 152 rows covers 300; OOB rows dropped) ---
    x3 = jax.random.normal(kx3, (300, num_inputs), dtype=jnp.float32)
    y_hat3 = jax.block_until_ready(model.forward(x3))
    assert y_hat3.shape == (300, num_classes)
    assert jnp.allclose(y_hat3, ref_fwd(x3), **tol), "mismatch vs reference (ragged batch)"

    print("KERNEL_OK")
</pallas_src>

<mosaic_0001>
module attributes {stable_mosaic.version = 11 : i64} {
  func.func @_mlr_forward_kernel(%arg0: i32, %arg1: memref<8x32xf32, #tpu.memory_space<vmem>>, %arg2: memref<32x128xbf16, #tpu.memory_space<vmem>>, %arg3: memref<1x128xf32, #tpu.memory_space<vmem>>, %arg4: memref<8x10xf32, #tpu.memory_space<vmem>>) attributes {dimension_semantics = [#tpu.dimension_semantics<parallel>], iteration_bounds = array<i64: 1>, scalar_prefetch = 0 : i64, scratch_operands = 0 : i64, tpu.core_type = #tpu.core_type<tc>, window_params = [{transform_indices = @transform_0, window_bounds = array<i64: 8, 32>}, {pipeline_mode = #tpu.pipeline_mode<synchronous>, transform_indices = @transform_1, window_bounds = array<i64: 32, 128>}, {pipeline_mode = #tpu.pipeline_mode<synchronous>, transform_indices = @transform_2, window_bounds = array<i64: 1, 128>}, {transform_indices = @transform_3, window_bounds = array<i64: 8, 10>}]} {
    %c0 = arith.constant 0 : index
    %c0_0 = arith.constant 0 : index
    %0 = vector.load %arg1[%c0, %c0_0] : memref<8x32xf32, #tpu.memory_space<vmem>>, vector<8x32xf32>
    %1 = arith.truncf %0 : vector<8x32xf32> to vector<8x32xbf16>
    %c0_1 = arith.constant 0 : index
    %c0_2 = arith.constant 0 : index
    %2 = vector.load %arg2[%c0_1, %c0_2] : memref<32x128xbf16, #tpu.memory_space<vmem>>, vector<32x128xbf16>
    %cst = arith.constant dense<0.000000e+00> : vector<8x128xf32>
    %3 = tpu.matmul %1, %2, %cst {dimension_numbers = #tpu.dot_dimension_numbers<[1], [0], [0], [1], [0, 0, 1, 1], [], []>} : vector<8x32xbf16>, vector<32x128xbf16>, vector<8x128xf32> -> vector<8x128xf32>
    %c0_3 = arith.constant 0 : index
    %c0_4 = arith.constant 0 : index
    %4 = vector.load %arg3[%c0_3, %c0_4] : memref<1x128xf32, #tpu.memory_space<vmem>>, vector<1x128xf32>
    %5 = vector.broadcast %4 : vector<1x128xf32> to vector<8x128xf32>
    %6 = arith.addf %3, %5 : vector<8x128xf32>
    %cst_5 = arith.constant dense<0xFF800000> : vector<8xf32>
    %7 = vector.multi_reduction <maximumf>, %6, %cst_5 [1] : vector<8x128xf32> to vector<8xf32>
    %8 = vector.shape_cast %7 : vector<8xf32> to vector<8x1xf32>
    %9 = vector.broadcast %8 : vector<8x1xf32> to vector<8x128xf32>
    %10 = arith.subf %6, %9 : vector<8x128xf32>
    %11 = math.exp %10 : vector<8x128xf32>
    %cst_6 = arith.constant dense<0.000000e+00> : vector<8xf32>
    %12 = vector.multi_reduction <add>, %11, %cst_6 [1] : vector<8x128xf32> to vector<8xf32>
    %13 = vector.shape_cast %12 : vector<8xf32> to vector<8x1xf32>
    %14 = tpu.reciprocal %13 {approx = true} : vector<8x1xf32> -> vector<8x1xf32>
    %15 = vector.broadcast %14 : vector<8x1xf32> to vector<8x128xf32>
    %16 = arith.mulf %11, %15 : vector<8x128xf32>
    %17 = vector.extract_strided_slice %16 {offsets = [0, 0], sizes = [8, 10], strides = [1, 1]} : vector<8x128xf32> to vector<8x10xf32>
    %c0_7 = arith.constant 0 : index
    %c0_8 = arith.constant 0 : index
    %18 = vector.load %arg4[%c0_7, %c0_8] : memref<8x10xf32, #tpu.memory_space<vmem>>, vector<8x10xf32>
    tpu.vector_store %arg4[%c0_7, %c0_8], %17 {strides = array<i32>} : memref<8x10xf32, #tpu.memory_space<vmem>>, vector<8x10xf32>,
    return
  }
  func.func @transform_0(%arg0: i32) -> (i32, i32) {
    %c0_i32 = arith.constant 0 : i32
    %c0_i32_0 = arith.constant 0 : i32
    return %arg0, %c0_i32 : i32, i32
  }
  func.func @transform_1(%arg0: i32) -> (i32, i32) {
    %c0_i32 = arith.constant 0 : i32
    %c0_i32_0 = arith.constant 0 : i32
    %c0_i32_1 = arith.constant 0 : i32
    return %c0_i32, %c0_i32_0 : i32, i32
  }
  func.func @transform_2(%arg0: i32) -> (i32, i32) {
    %c0_i32 = arith.constant 0 : i32
    %c0_i32_0 = arith.constant 0 : i32
    %c0_i32_1 = arith.constant 0 : i32
    return %c0_i32, %c0_i32_0 : i32, i32
  }
  func.func @transform_3(%arg0: i32) -> (i32, i32) {
    %c0_i32 = arith.constant 0 : i32
    %c0_i32_0 = arith.constant 0 : i32
    return %arg0, %c0_i32 : i32, i32
  }
}

</mosaic_0001>

<llo_original>
// kernel: _mlr_forward_padded.1
$region0: #{_mlr_forward_padded.1}
  #allocation0 [shape = 'u32[]', space=smem, size = 0x4, offset = 0x4, fixed_abs, tag = 'smem constant byte address 0x4 - core index']
  #allocation1 [shape = 'u32[144,128]{1,0:T(1,128)}', space=vmem, size = 0x12000, scoped, tag = 'internal scratch']
  %s0 = inlined_call_operand.hbm [shape: f32[8,32], index: 0, kind: input, shape index: {}]
  %s1 = inlined_call_operand.hbm [shape: bf16[32,128], index: 1, kind: input, shape index: {}]
  %s2 = inlined_call_operand.vmem [shape: f32[1,128], index: 2, kind: input, shape index: {}]
  %s3 = inlined_call_operand.hbm [shape: f32[8,10], index: 3, kind: output, shape index: {}]
  %s4 = sld [smem:[#allocation0]]
  $region30: #{_mlr_forward_padded.1} parent=0
    _
  %s6 = ssub.s32 1, %s4
  %s7 = scalar_select 0, %s6, %s4
  $region1: #{_mlr_forward_padded.1} parent=0
    #allocation2 [shape = 'u8[4096]{0}', space=vmem, size = 0x1000, scoped, tag = 'input window, operand 0, single buffered']
    #allocation3 [shape = 's32[1]{0}', space=sflag, size = 0x4, scoped, tag = 'scoped memory for _mlr_forward_padded.1']
    #allocation4 [shape = 's32[1]{0}', space=sflag, size = 0x4, scoped, tag = 'scoped memory for _mlr_forward_padded.1']
    #allocation5 [shape = 'u8[8192]{0}', space=vmem, size = 0x2000, scoped, tag = 'input window, operand 1, single buffered']
    #allocation6 [shape = 's32[1]{0}', space=sflag, size = 0x4, scoped, tag = 'scoped memory for _mlr_forward_padded.1']
    #allocation7 [shape = 'u8[4096]{0}', space=vmem, size = 0x1000, scoped, tag = 'output window, operand 0, single buffered']
    %8 = vsyncpa [#allocation3], 0
    %9 = vsyncpa [#allocation6], 0
    %10 = vsyncpa [#allocation4], 0
    // Predicated region
    $region2: #{_mlr_forward_padded.1} parent=1 // pred_check
      _
    $region3: #{_mlr_forward_padded.1} parent=1 // pred_check_branch
      %12 = sbr.rel (0) target = $region5
    $region4: #{_mlr_forward_padded.1} parent=1 // pred_region
      %s14 = ssub.s32 128, 128
      %15 = vsyncadd [#allocation3], %s14
      %s17 = sshll.u32 [#allocation2], 4
      %s18 = int_to_ptr.vmem [resolvable:$true] %s17
      %20 = dma.hbm_to_vmem [thread:$0]  %s0, 128, %s18, [#allocation3]
    $region5: #{_mlr_forward_padded.1} parent=1 // pred_fallthru
      _
    // Predicated region
    $region6: #{_mlr_forward_padded.1} parent=1 // pred_check
      _
    $region7: #{_mlr_forward_padded.1} parent=1 // pred_check_branch
      %22 = sbr.rel (0) target = $region9
    $region8: #{_mlr_forward_padded.1} parent=1 // pred_region
      %s24 = ssub.s32 256, 256
      %25 = vsyncadd [#allocation6], %s24
      %s26 = sshll.u32 [#allocation5], 4
      %s27 = int_to_ptr.vmem [resolvable:$true] %s26
      %32 = dma.hbm_to_vmem [thread:$0]  %s1, 256, %s27, [#allocation6], 64, 64, 4
    $region9: #{_mlr_forward_padded.1} parent=1 // pred_fallthru
      _
    // Predicated region
    $region10: #{_mlr_forward_padded.1} parent=1 // pred_check
      _
    $region11: #{_mlr_forward_padded.1} parent=1 // pred_check_branch
      %34 = sbr.rel (0) target = $region13
    $region12: #{_mlr_forward_padded.1} parent=1 // pred_region
      _
    $region13: #{_mlr_forward_padded.1} parent=1 // pred_fallthru
      _
    // Predicated region
    $region14: #{_mlr_forward_padded.1} parent=1 // pred_check
      _
    $region15: #{_mlr_forward_padded.1} parent=1 // pred_check_branch
      %36 = sbr.rel (0) target = $region17
    $region16: #{_mlr_forward_padded.1} parent=1 // pred_region
      %37 = dma.done [#allocation3], 128
    $region17: #{_mlr_forward_padded.1} parent=1 // pred_fallthru
      _
    // Predicated region
    $region18: #{_mlr_forward_padded.1} parent=1 // pred_check
      _
    $region19: #{_mlr_forward_padded.1} parent=1 // pred_check_branch
      %39 = sbr.rel (0) target = $region21
    $region20: #{_mlr_forward_padded.1} parent=1 // pred_region
      %40 = dma.done [#allocation6], 256
    $region21: #{_mlr_forward_padded.1} parent=1 // pred_fallthru
      _
    %v42 = vld [vmem:[#allocation2] sm:$0xff]
    %v43 = vpack.c.bf16 %v42, %v42
    %v44 = vld [vmem:[#allocation5] sm:$0xf]
    %v45 = vld [vmem:[#allocation5 + $0x4] sm:$0xf]
    %v46 = vld [vmem:[#allocation5 + $0x8] sm:$0xf]
    %v47 = vld [vmem:[#allocation5 + $0xc] sm:$0xf]
    %v48 = vld [vmem:[%s2] sm:$0x1]
    %v50 = vlaneseq
    %v51 = vshrl.u32 %v50, 7
    %v52 = vsub.s32 0, %v51
    %v53 = vrot.slane %v48, %v52
    %v59 = vunpack.c.l.b16 %v44
    %v60 = vunpack.c.l.b16 %v45
    %v61 = vunpack.c.l.b16 %v46
    %v62 = vunpack.c.l.b16 %v47
    %v63 = vpack.c.b16 %v60, %v59
    %v64 = vpack.c.b16 %v62, %v61
    %vm67 = vcmask 261120
    %v69 = vsel %vm67, %v43, 0
    %71 = vmatprep.subr.bf16.mxu0 0
    %72 = vmatpush1.bf16.msra.mxu0 0
    %73 = vmatprep.subr.bf16.mxu0 0
    %74 = vmatpush1.bf16.msra.mxu0 0
    %75 = vmatprep.subr.bf16.mxu0 0
    %76 = vmatpush1.bf16.msra.mxu0 0
    %77 = vmatprep.subr.bf16.mxu0 0
    %78 = vmatpush1.bf16.msra.mxu0 0
    %79 = vmatprep.subr.bf16.mxu0 0
    %80 = vmatpush1.bf16.msra.mxu0 0
    %81 = vmatprep.subr.bf16.mxu0 0
    %82 = vmatpush1.bf16.msra.mxu0 0
    %83 = vmatprep.subr.bf16.mxu0 0
    %84 = vmatpush1.bf16.msra.mxu0 %v64
    %85 = vmatprep.subr.bf16.mxu0 0
    %86 = vmatpush1.bf16.msra.mxu0 %v63
    %87 = vmatprep.subr.bf16.mxu0 0
    %88 = vmatpush2.bf16.msra.mxu0 0
    %89 = vmatprep.subr.bf16.mxu0 0
    %90 = vmatpush2.bf16.msra.mxu0 0
    %91 = vmatprep.subr.bf16.mxu0 0
    %92 = vmatpush2.bf16.msra.mxu0 0
    %93 = vmatprep.subr.bf16.mxu0 0
    %94 = vmatpush2.bf16.msra.mxu0 0
    %95 = vmatprep.subr.bf16.mxu0 0
    %96 = vmatpush2.bf16.msra.mxu0 0
    %97 = vmatprep.subr.bf16.mxu0 0
    %98 = vmatpush2.bf16.msra.mxu0 0
    %99 = vmatprep.subr.bf16.mxu0 0
    %100 = vmatpush2.bf16.msra.mxu0 0
    %101 = vmatprep.subr.bf16.mxu0 0
    %102 = vmatpush2.bf16.msra.mxu0 0
    %103 = vmatprep.mubr.bf16.mxu0 0
    %104 = vmatmul.mubr.bf16.gmra.mxu0 %v69
    %v105 = vpop.f32.mrf.mxu0
    %v106 = vadd.f32 %v53, %v105
    %v107 = vpop.f32.mrf.mxu0
    %v108 = vpop.f32.mrf.mxu0
    %v109 = vpop.f32.mrf.mxu0
    %110 = vdwg.mxu0
    %111 = vmax.xlane.f32.xlu0 %v106
    %v112 = vpop.xlane.xlu0 %111
    %v113 = vsub.f32 %v106, %v112
    %v114 = vmul.f32 %v113, 1.442695
    %v115 = vpow.pop %v114
    %116 = vadd.xlane.f32.xlu0 %v115
    %v117 = vpop.xlane.xlu0 %116
    %v118 = vrcp.pop %v117
    %v119 = vmul.f32 %v115, %v118
    %vm120 = vcmask 80896
    %121 = vst.msk [vmem:[#allocation7] sm:$0xff] %vm120, %v119
    // Predicated region
    $region22: #{_mlr_forward_padded.1} parent=1 // pred_check
      _
    $region23: #{_mlr_forward_padded.1} parent=1 // pred_check_branch
      %123 = sbr.rel (0) target = $region25
    $region24: #{_mlr_forward_padded.1} parent=1 // pred_region
      %s125 = ssub.s32 128, 128
      %126 = vsyncadd [#allocation4], %s125
      %s128 = sshll.u32 [#allocation7], 4
      %s129 = int_to_ptr.vmem [resolvable:$true] %s128
      %131 = dma.vmem_to_hbm [thread:$0]  %s129, 128, %s3, [#allocation4]
    $region25: #{_mlr_forward_padded.1} parent=1 // pred_fallthru
      _
    // Predicated region
    $region26: #{_mlr_forward_padded.1} parent=1 // pred_check
      _
    $region27: #{_mlr_forward_padded.1} parent=1 // pred_check_branch
      %133 = sbr.rel (0) target = $region29
    $region28: #{_mlr_forward_padded.1} parent=1 // pred_region
      %134 = dma.done [#allocation4], 128
    $region29: #{_mlr_forward_padded.1} parent=1 // pred_fallthru
      _
    %135 = vsyncpa [#allocation3], 1
    %136 = vsyncpa [#allocation6], 1
    %137 = vsyncpa [#allocation4], 1

</llo_original>
